<compile_context>
chip_gen: v6e
topology: v6e:2x2x1
jax: 0.10.0
libtpu: 0.0.40
codegen_flags: <defaults>
</compile_context>

<pallas_src>
import functools

import jax
import jax.numpy as jnp
from jax.experimental import pallas as pl
from jax.experimental.pallas import tpu as pltpu


def _round_up(x, m):
    return (x + m - 1) // m * m


def _carver_kernel(stack_ref, gxy_ref, out_ref, *, H, W, Hp, Wp, C, offsets,
                   invalid_value, align_corners, r):
    # stack_ref: (1, K*C, Hp*Wp)  gxy_ref: (1, 2, TP)  out_ref: (1, C, TP)
    s = stack_ref[0]                       # (K*C, Hp*Wp) f32
    g = gxy_ref[0]                         # (2, TP) f32
    gx = g[0:1, :]                         # (1, TP)
    gy = g[1:2, :]
    TP = gx.shape[-1]

    if align_corners:
        x = (gx + 1.0) * (0.5 * (W - 1))
        y = (gy + 1.0) * (0.5 * (H - 1))
    else:
        x = ((gx + 1.0) * W - 1.0) * 0.5
        y = ((gy + 1.0) * H - 1.0) * 0.5

    # TODO(synk): CUDA ext rounding mode unknown; jnp.round is half-to-even.
    ix = jnp.round(x).astype(jnp.int32)    # nearest pixel (1, TP)
    iy = jnp.round(y).astype(jnp.int32)

    # Nearest-pixel index in the r-padded image.  Clipping only changes the
    # gathered values when the whole (2r+1)^2 window is out of bounds, in
    # which case every offset is masked out by `inb` below.
    cxp = jnp.clip(ix + r, 0, Wp - 1)
    cyp = jnp.clip(iy + r, 0, Hp - 1)
    lin = cyp * Wp + cxp                   # (1, TP)

    # Single one-hot gather for ALL window offsets at once (MXU matmul):
    # stack row k*C+c at column lin[p] holds inp[c, iy+dy_k, ix+dx_k]
    # (invalid_value when that pixel is outside the original image).
    iota = jax.lax.broadcasted_iota(jnp.int32, (Hp * Wp, TP), 0)
    onehot = (iota == lin).astype(jnp.float32)                      # (Hp*Wp,TP)
    vals = jnp.dot(s, onehot, preferred_element_type=jnp.float32)   # (K*C, TP)

    ixf = ix.astype(jnp.float32)
    iyf = iy.astype(jnp.float32)
    best_d2 = jnp.full((C, TP), 1e30, jnp.float32)
    best_val = jnp.full((C, TP), invalid_value, jnp.float32)
    # TODO(synk): for C < 8 the selection chain wastes sublanes; could pack
    #   several batch items per block if this ever dominates.
    for k, (dy, dx) in enumerate(offsets):
        val = jax.lax.slice_in_dim(vals, k * C, (k + 1) * C, axis=0)  # (C,TP)
        jx = ix + dx
        jy = iy + dy
        inb = (jx >= 0) & (jx < W) & (jy >= 0) & (jy < H)             # (1,TP)
        d2 = (ixf + dx - x) ** 2 + (iyf + dy - y) ** 2                # (1,TP)
        valid = inb & (val != invalid_value)                          # (C,TP)
        better = valid & (d2 < best_d2)
        best_val = jnp.where(better, val, best_val)
        best_d2 = jnp.where(better, d2, best_d2)

    out_ref[0] = best_val.astype(out_ref.dtype)


def space_carver_grid_sample(inp, grid, interpolation_mode='MaskPlusFix',
                             padding_mode='Zeros', align_corners=True,
                             invalid_value=0.0, fix_search_area=1):
    """JAX/Pallas equivalent of SpaceCarverGridSamplerModule.forward.

    inp:  (B, C, H, W) float
    grid: (B, H_out, W_out, 2) float in [-1, 1]
    returns (B, C, H_out, W_out) in inp.dtype
    """
    assert interpolation_mode in ('MaskPlusFix', 'DepthPlusFix'), \
        "DepthBilinearPlusFix not implemented"  # TODO(synk): bilinear variant
    assert padding_mode == 'Zeros'              # TODO(synk): Border/Reflection

    B, C, H, W = inp.shape
    Bg, Ho, Wo, two = grid.shape
    assert Bg == B and two == 2
    P = Ho * Wo

    r = int(fix_search_area)
    K = (2 * r + 1) ** 2
    Hp, Wp = H + 2 * r, W + 2 * r
    offsets = tuple((dy, dx)
                    for dy in range(-r, r + 1) for dx in range(-r, r + 1))
    inv = float(invalid_value)

    # Shifted window stack over an invalid-value padded image:
    #   stack[b, k*C+c, yp*Wp + xp] == inp[b, c, yp - r + dy_k, xp - r + dx_k]
    # (== invalid_value wherever that index falls outside the image).
    pad2 = jnp.pad(inp.astype(jnp.float32),
                   ((0, 0), (0, 0), (2 * r, 2 * r), (2 * r, 2 * r)),
                   constant_values=inv)
    slabs = [pad2[:, :, r + dy:r + dy + Hp, r + dx:r + dx + Wp]
             for (dy, dx) in offsets]
    stack = jnp.stack(slabs, axis=1).reshape(B, K * C, Hp * Wp)

    # Pack gx/gy into one array and pad P up to a lane-dense tile multiple.
    P128 = _round_up(P, 128)
    TP = min(512, P128)                     # tile of the output-point axis
    P_pad = _round_up(P, TP)
    gxy = jnp.transpose(grid.reshape(B, P, 2).astype(jnp.float32), (0, 2, 1))
    if P_pad > P:
        gxy = jnp.pad(gxy, ((0, 0), (0, 0), (0, P_pad - P)))

    kernel = functools.partial(
        _carver_kernel, H=H, W=W, Hp=Hp, Wp=Wp, C=C, offsets=offsets,
        invalid_value=inv, align_corners=bool(align_corners), r=r)

    out = pl.pallas_call(
        kernel,
        out_shape=jax.ShapeDtypeStruct((B, C, P_pad), inp.dtype),
        grid_spec=pltpu.PrefetchScalarGridSpec(
            num_scalar_prefetch=0,
            grid=(B, P_pad // TP),
            in_specs=[
                # image stack: VMEM-resident across the P-tile axis
                pl.BlockSpec((1, K * C, Hp * Wp), lambda b, p: (b, 0, 0)),
                # packed grid coords: streamed per P tile
                pl.BlockSpec((1, 2, TP), lambda b, p: (b, 0, p)),
            ],
            out_specs=pl.BlockSpec((1, C, TP), lambda b, p: (b, 0, p)),
        ),
        compiler_params=pltpu.CompilerParams(
            dimension_semantics=("parallel", "parallel"),
            vmem_limit_bytes=48 * 1024 * 1024),
    )(stack, gxy)

    return out[:, :, :P].reshape(B, C, Ho, Wo)


if __name__ == "__main__":
    key = jax.random.PRNGKey(0)
    k1, k2, k3 = jax.random.split(key, 3)

    B, C, H, W = 2, 4, 16, 16
    Ho, Wo = 8, 8

    # depth-like input with "invalid" (== invalid_value = 0.0) holes
    depth = jax.random.uniform(k1, (B, C, H, W), jnp.float32, 0.5, 2.0)
    holes = jax.random.bernoulli(k2, 0.3, (B, C, H, W))
    depth = jnp.where(holes, 0.0, depth)

    grid = jax.random.uniform(k3, (B, Ho, Wo, 2), jnp.float32, -1.0, 1.0)

    out = space_carver_grid_sample(depth, grid,
                                   interpolation_mode='MaskPlusFix',
                                   padding_mode='Zeros',
                                   align_corners=True,
                                   invalid_value=0.0,
                                   fix_search_area=1)
    jax.block_until_ready(out)
    assert out.shape == (B, C, Ho, Wo)
    assert out.dtype == depth.dtype
    print("KERNEL_OK")
</pallas_src>

<mosaic_0001>
module attributes {stable_mosaic.version = 11 : i64} {
  func.func @_carver_kernel(%arg0: i32, %arg1: i32, %arg2: memref<1x36x324xf32, #tpu.memory_space<vmem>>, %arg3: memref<1x2x128xf32, #tpu.memory_space<vmem>>, %arg4: memref<1x4x128xf32, #tpu.memory_space<vmem>>) attributes {dimension_semantics = [#tpu.dimension_semantics<parallel>, #tpu.dimension_semantics<parallel>], iteration_bounds = array<i64: 2, 1>, scalar_prefetch = 0 : i64, scratch_operands = 0 : i64, tpu.core_type = #tpu.core_type<tc>, window_params = [{transform_indices = @transform_0, window_bounds = array<i64: 1, 36, 324>}, {transform_indices = @transform_1, window_bounds = array<i64: 1, 2, 128>}, {transform_indices = @transform_2, window_bounds = array<i64: 1, 4, 128>}]} {
    %c0 = arith.constant 0 : index
    %c0_0 = arith.constant 0 : index
    %c0_1 = arith.constant 0 : index
    %0 = vector.load %arg2[%c0, %c0_0, %c0_1] : memref<1x36x324xf32, #tpu.memory_space<vmem>>, vector<1x36x324xf32>
    %1 = vector.shape_cast %0 : vector<1x36x324xf32> to vector<36x324xf32>
    %c0_2 = arith.constant 0 : index
    %c0_3 = arith.constant 0 : index
    %c0_4 = arith.constant 0 : index
    %2 = vector.load %arg3[%c0_2, %c0_3, %c0_4] : memref<1x2x128xf32, #tpu.memory_space<vmem>>, vector<1x2x128xf32>
    %3 = vector.shape_cast %2 : vector<1x2x128xf32> to vector<2x128xf32>
    %4 = vector.extract_strided_slice %3 {offsets = [0, 0], sizes = [1, 128], strides = [1, 1]} : vector<2x128xf32> to vector<1x128xf32>
    %5 = vector.extract_strided_slice %3 {offsets = [1, 0], sizes = [1, 128], strides = [1, 1]} : vector<2x128xf32> to vector<1x128xf32>
    %cst = arith.constant 1.000000e+00 : f32
    %6 = vector.broadcast %cst : f32 to vector<1x128xf32>
    %7 = arith.addf %4, %6 : vector<1x128xf32>
    %cst_5 = arith.constant 7.500000e+00 : f32
    %8 = vector.broadcast %cst_5 : f32 to vector<1x128xf32>
    %9 = arith.mulf %7, %8 : vector<1x128xf32>
    %cst_6 = arith.constant 1.000000e+00 : f32
    %10 = vector.broadcast %cst_6 : f32 to vector<1x128xf32>
    %11 = arith.addf %5, %10 : vector<1x128xf32>
    %cst_7 = arith.constant 7.500000e+00 : f32
    %12 = vector.broadcast %cst_7 : f32 to vector<1x128xf32>
    %13 = arith.mulf %11, %12 : vector<1x128xf32>
    %14 = math.roundeven %9 : vector<1x128xf32>
    %15 = arith.fptosi %14 : vector<1x128xf32> to vector<1x128xi32>
    %16 = math.roundeven %13 : vector<1x128xf32>
    %17 = arith.fptosi %16 : vector<1x128xf32> to vector<1x128xi32>
    %c1_i32 = arith.constant 1 : i32
    %18 = vector.broadcast %c1_i32 : i32 to vector<1x128xi32>
    %19 = arith.addi %15, %18 : vector<1x128xi32>
    %c0_i32 = arith.constant 0 : i32
    %c17_i32 = arith.constant 17 : i32
    %20 = vector.broadcast %c0_i32 : i32 to vector<1x128xi32>
    %21 = arith.maxsi %20, %19 : vector<1x128xi32>
    %22 = vector.broadcast %c17_i32 : i32 to vector<1x128xi32>
    %23 = arith.minsi %22, %21 : vector<1x128xi32>
    %c1_i32_8 = arith.constant 1 : i32
    %24 = vector.broadcast %c1_i32_8 : i32 to vector<1x128xi32>
    %25 = arith.addi %17, %24 : vector<1x128xi32>
    %c0_i32_9 = arith.constant 0 : i32
    %c17_i32_10 = arith.constant 17 : i32
    %26 = vector.broadcast %c0_i32_9 : i32 to vector<1x128xi32>
    %27 = arith.maxsi %26, %25 : vector<1x128xi32>
    %28 = vector.broadcast %c17_i32_10 : i32 to vector<1x128xi32>
    %29 = arith.minsi %28, %27 : vector<1x128xi32>
    %c18_i32 = arith.constant 18 : i32
    %30 = vector.broadcast %c18_i32 : i32 to vector<1x128xi32>
    %31 = arith.muli %29, %30 : vector<1x128xi32>
    %32 = arith.addi %31, %23 : vector<1x128xi32>
    %33 = tpu.iota {dimensions = array<i32: 0>} : vector<324x128xi32>
    %34 = vector.broadcast %32 : vector<1x128xi32> to vector<324x128xi32>
    %35 = arith.cmpi eq, %33, %34 : vector<324x128xi32>
    %36 = arith.extui %35 : vector<324x128xi1> to vector<324x128xi32>
    %37 = arith.sitofp %36 : vector<324x128xi32> to vector<324x128xf32>
    %cst_11 = arith.constant dense<0.000000e+00> : vector<36x128xf32>
    %38 = tpu.matmul %1, %37, %cst_11 {dimension_numbers = #tpu.dot_dimension_numbers<[1], [0], [0], [1], [0, 0, 1, 1], [], []>} : vector<36x324xf32>, vector<324x128xf32>, vector<36x128xf32> -> vector<36x128xf32>
    %39 = arith.sitofp %15 : vector<1x128xi32> to vector<1x128xf32>
    %40 = arith.sitofp %17 : vector<1x128xi32> to vector<1x128xf32>
    %cst_12 = arith.constant 1.000000e+30 : f32
    %41 = vector.broadcast %cst_12 : f32 to vector<4x128xf32>
    %cst_13 = arith.constant 0.000000e+00 : f32
    %42 = vector.broadcast %cst_13 : f32 to vector<4x128xf32>
    %43 = vector.extract_strided_slice %38 {offsets = [0, 0], sizes = [4, 128], strides = [1, 1]} : vector<36x128xf32> to vector<4x128xf32>
    %c-1_i32 = arith.constant -1 : i32
    %44 = vector.broadcast %c-1_i32 : i32 to vector<1x128xi32>
    %45 = arith.addi %15, %44 : vector<1x128xi32>
    %c-1_i32_14 = arith.constant -1 : i32
    %46 = vector.broadcast %c-1_i32_14 : i32 to vector<1x128xi32>
    %47 = arith.addi %17, %46 : vector<1x128xi32>
    %c0_i32_15 = arith.constant 0 : i32
    %48 = vector.broadcast %c0_i32_15 : i32 to vector<1x128xi32>
    %49 = arith.cmpi sge, %45, %48 : vector<1x128xi32>
    %c16_i32 = arith.constant 16 : i32
    %50 = vector.broadcast %c16_i32 : i32 to vector<1x128xi32>
    %51 = arith.cmpi slt, %45, %50 : vector<1x128xi32>
    %52 = arith.andi %49, %51 : vector<1x128xi1>
    %c0_i32_16 = arith.constant 0 : i32
    %53 = vector.broadcast %c0_i32_16 : i32 to vector<1x128xi32>
    %54 = arith.cmpi sge, %47, %53 : vector<1x128xi32>
    %55 = arith.andi %52, %54 : vector<1x128xi1>
    %c16_i32_17 = arith.constant 16 : i32
    %56 = vector.broadcast %c16_i32_17 : i32 to vector<1x128xi32>
    %57 = arith.cmpi slt, %47, %56 : vector<1x128xi32>
    %58 = arith.andi %55, %57 : vector<1x128xi1>
    %cst_18 = arith.constant -1.000000e+00 : f32
    %59 = vector.broadcast %cst_18 : f32 to vector<1x128xf32>
    %60 = arith.addf %39, %59 : vector<1x128xf32>
    %61 = arith.subf %60, %9 : vector<1x128xf32>
    %62 = arith.mulf %61, %61 : vector<1x128xf32>
    %cst_19 = arith.constant -1.000000e+00 : f32
    %63 = vector.broadcast %cst_19 : f32 to vector<1x128xf32>
    %64 = arith.addf %40, %63 : vector<1x128xf32>
    %65 = arith.subf %64, %13 : vector<1x128xf32>
    %66 = arith.mulf %65, %65 : vector<1x128xf32>
    %67 = arith.addf %62, %66 : vector<1x128xf32>
    %cst_20 = arith.constant 0.000000e+00 : f32
    %68 = vector.broadcast %cst_20 : f32 to vector<4x128xf32>
    %69 = arith.cmpf one, %43, %68 : vector<4x128xf32>
    %70 = vector.broadcast %58 : vector<1x128xi1> to vector<4x128xi1>
    %71 = arith.andi %70, %69 : vector<4x128xi1>
    %72 = vector.broadcast %67 : vector<1x128xf32> to vector<4x128xf32>
    %73 = arith.cmpf olt, %72, %41 : vector<4x128xf32>
    %74 = arith.andi %71, %73 : vector<4x128xi1>
    %75 = arith.select %74, %43, %42 : vector<4x128xi1>, vector<4x128xf32>
    %76 = vector.shape_cast %67 : vector<1x128xf32> to vector<1x128xf32>
    %77 = vector.broadcast %76 : vector<1x128xf32> to vector<4x128xf32>
    %78 = arith.select %74, %77, %41 : vector<4x128xi1>, vector<4x128xf32>
    %79 = vector.extract_strided_slice %38 {offsets = [4, 0], sizes = [4, 128], strides = [1, 1]} : vector<36x128xf32> to vector<4x128xf32>
    %c0_i32_21 = arith.constant 0 : i32
    %80 = vector.broadcast %c0_i32_21 : i32 to vector<1x128xi32>
    %81 = arith.addi %15, %80 : vector<1x128xi32>
    %c-1_i32_22 = arith.constant -1 : i32
    %82 = vector.broadcast %c-1_i32_22 : i32 to vector<1x128xi32>
    %83 = arith.addi %17, %82 : vector<1x128xi32>
    %c0_i32_23 = arith.constant 0 : i32
    %84 = vector.broadcast %c0_i32_23 : i32 to vector<1x128xi32>
    %85 = arith.cmpi sge, %81, %84 : vector<1x128xi32>
    %c16_i32_24 = arith.constant 16 : i32
    %86 = vector.broadcast %c16_i32_24 : i32 to vector<1x128xi32>
    %87 = arith.cmpi slt, %81, %86 : vector<1x128xi32>
    %88 = arith.andi %85, %87 : vector<1x128xi1>
    %c0_i32_25 = arith.constant 0 : i32
    %89 = vector.broadcast %c0_i32_25 : i32 to vector<1x128xi32>
    %90 = arith.cmpi sge, %83, %89 : vector<1x128xi32>
    %91 = arith.andi %88, %90 : vector<1x128xi1>
    %c16_i32_26 = arith.constant 16 : i32
    %92 = vector.broadcast %c16_i32_26 : i32 to vector<1x128xi32>
    %93 = arith.cmpi slt, %83, %92 : vector<1x128xi32>
    %94 = arith.andi %91, %93 : vector<1x128xi1>
    %cst_27 = arith.constant 0.000000e+00 : f32
    %95 = vector.broadcast %cst_27 : f32 to vector<1x128xf32>
    %96 = arith.addf %39, %95 : vector<1x128xf32>
    %97 = arith.subf %96, %9 : vector<1x128xf32>
    %98 = arith.mulf %97, %97 : vector<1x128xf32>
    %cst_28 = arith.constant -1.000000e+00 : f32
    %99 = vector.broadcast %cst_28 : f32 to vector<1x128xf32>
    %100 = arith.addf %40, %99 : vector<1x128xf32>
    %101 = arith.subf %100, %13 : vector<1x128xf32>
    %102 = arith.mulf %101, %101 : vector<1x128xf32>
    %103 = arith.addf %98, %102 : vector<1x128xf32>
    %cst_29 = arith.constant 0.000000e+00 : f32
    %104 = vector.broadcast %cst_29 : f32 to vector<4x128xf32>
    %105 = arith.cmpf one, %79, %104 : vector<4x128xf32>
    %106 = vector.broadcast %94 : vector<1x128xi1> to vector<4x128xi1>
    %107 = arith.andi %106, %105 : vector<4x128xi1>
    %108 = vector.broadcast %103 : vector<1x128xf32> to vector<4x128xf32>
    %109 = arith.cmpf olt, %108, %78 : vector<4x128xf32>
    %110 = arith.andi %107, %109 : vector<4x128xi1>
    %111 = arith.select %110, %79, %75 : vector<4x128xi1>, vector<4x128xf32>
    %112 = vector.shape_cast %103 : vector<1x128xf32> to vector<1x128xf32>
    %113 = vector.broadcast %112 : vector<1x128xf32> to vector<4x128xf32>
    %114 = arith.select %110, %113, %78 : vector<4x128xi1>, vector<4x128xf32>
    %115 = vector.extract_strided_slice %38 {offsets = [8, 0], sizes = [4, 128], strides = [1, 1]} : vector<36x128xf32> to vector<4x128xf32>
    %c1_i32_30 = arith.constant 1 : i32
    %116 = vector.broadcast %c1_i32_30 : i32 to vector<1x128xi32>
    %117 = arith.addi %15, %116 : vector<1x128xi32>
    %c-1_i32_31 = arith.constant -1 : i32
    %118 = vector.broadcast %c-1_i32_31 : i32 to vector<1x128xi32>
    %119 = arith.addi %17, %118 : vector<1x128xi32>
    %c0_i32_32 = arith.constant 0 : i32
    %120 = vector.broadcast %c0_i32_32 : i32 to vector<1x128xi32>
    %121 = arith.cmpi sge, %117, %120 : vector<1x128xi32>
    %c16_i32_33 = arith.constant 16 : i32
    %122 = vector.broadcast %c16_i32_33 : i32 to vector<1x128xi32>
    %123 = arith.cmpi slt, %117, %122 : vector<1x128xi32>
    %124 = arith.andi %121, %123 : vector<1x128xi1>
    %c0_i32_34 = arith.constant 0 : i32
    %125 = vector.broadcast %c0_i32_34 : i32 to vector<1x128xi32>
    %126 = arith.cmpi sge, %119, %125 : vector<1x128xi32>
    %127 = arith.andi %124, %126 : vector<1x128xi1>
    %c16_i32_35 = arith.constant 16 : i32
    %128 = vector.broadcast %c16_i32_35 : i32 to vector<1x128xi32>
    %129 = arith.cmpi slt, %119, %128 : vector<1x128xi32>
    %130 = arith.andi %127, %129 : vector<1x128xi1>
    %cst_36 = arith.constant 1.000000e+00 : f32
    %131 = vector.broadcast %cst_36 : f32 to vector<1x128xf32>
    %132 = arith.addf %39, %131 : vector<1x128xf32>
    %133 = arith.subf %132, %9 : vector<1x128xf32>
    %134 = arith.mulf %133, %133 : vector<1x128xf32>
    %cst_37 = arith.constant -1.000000e+00 : f32
    %135 = vector.broadcast %cst_37 : f32 to vector<1x128xf32>
    %136 = arith.addf %40, %135 : vector<1x128xf32>
    %137 = arith.subf %136, %13 : vector<1x128xf32>
    %138 = arith.mulf %137, %137 : vector<1x128xf32>
    %139 = arith.addf %134, %138 : vector<1x128xf32>
    %cst_38 = arith.constant 0.000000e+00 : f32
    %140 = vector.broadcast %cst_38 : f32 to vector<4x128xf32>
    %141 = arith.cmpf one, %115, %140 : vector<4x128xf32>
    %142 = vector.broadcast %130 : vector<1x128xi1> to vector<4x128xi1>
    %143 = arith.andi %142, %141 : vector<4x128xi1>
    %144 = vector.broadcast %139 : vector<1x128xf32> to vector<4x128xf32>
    %145 = arith.cmpf olt, %144, %114 : vector<4x128xf32>
    %146 = arith.andi %143, %145 : vector<4x128xi1>
    %147 = arith.select %146, %115, %111 : vector<4x128xi1>, vector<4x128xf32>
    %148 = vector.shape_cast %139 : vector<1x128xf32> to vector<1x128xf32>
    %149 = vector.broadcast %148 : vector<1x128xf32> to vector<4x128xf32>
    %150 = arith.select %146, %149, %114 : vector<4x128xi1>, vector<4x128xf32>
    %151 = vector.extract_strided_slice %38 {offsets = [12, 0], sizes = [4, 128], strides = [1, 1]} : vector<36x128xf32> to vector<4x128xf32>
    %c-1_i32_39 = arith.constant -1 : i32
    %152 = vector.broadcast %c-1_i32_39 : i32 to vector<1x128xi32>
    %153 = arith.addi %15, %152 : vector<1x128xi32>
    %c0_i32_40 = arith.constant 0 : i32
    %154 = vector.broadcast %c0_i32_40 : i32 to vector<1x128xi32>
    %155 = arith.addi %17, %154 : vector<1x128xi32>
    %c0_i32_41 = arith.constant 0 : i32
    %156 = vector.broadcast %c0_i32_41 : i32 to vector<1x128xi32>
    %157 = arith.cmpi sge, %153, %156 : vector<1x128xi32>
    %c16_i32_42 = arith.constant 16 : i32
    %158 = vector.broadcast %c16_i32_42 : i32 to vector<1x128xi32>
    %159 = arith.cmpi slt, %153, %158 : vector<1x128xi32>
    %160 = arith.andi %157, %159 : vector<1x128xi1>
    %c0_i32_43 = arith.constant 0 : i32
    %161 = vector.broadcast %c0_i32_43 : i32 to vector<1x128xi32>
    %162 = arith.cmpi sge, %155, %161 : vector<1x128xi32>
    %163 = arith.andi %160, %162 : vector<1x128xi1>
    %c16_i32_44 = arith.constant 16 : i32
    %164 = vector.broadcast %c16_i32_44 : i32 to vector<1x128xi32>
    %165 = arith.cmpi slt, %155, %164 : vector<1x128xi32>
    %166 = arith.andi %163, %165 : vector<1x128xi1>
    %cst_45 = arith.constant -1.000000e+00 : f32
    %167 = vector.broadcast %cst_45 : f32 to vector<1x128xf32>
    %168 = arith.addf %39, %167 : vector<1x128xf32>
    %169 = arith.subf %168, %9 : vector<1x128xf32>
    %170 = arith.mulf %169, %169 : vector<1x128xf32>
    %cst_46 = arith.constant 0.000000e+00 : f32
    %171 = vector.broadcast %cst_46 : f32 to vector<1x128xf32>
    %172 = arith.addf %40, %171 : vector<1x128xf32>
    %173 = arith.subf %172, %13 : vector<1x128xf32>
    %174 = arith.mulf %173, %173 : vector<1x128xf32>
    %175 = arith.addf %170, %174 : vector<1x128xf32>
    %cst_47 = arith.constant 0.000000e+00 : f32
    %176 = vector.broadcast %cst_47 : f32 to vector<4x128xf32>
    %177 = arith.cmpf one, %151, %176 : vector<4x128xf32>
    %178 = vector.broadcast %166 : vector<1x128xi1> to vector<4x128xi1>
    %179 = arith.andi %178, %177 : vector<4x128xi1>
    %180 = vector.broadcast %175 : vector<1x128xf32> to vector<4x128xf32>
    %181 = arith.cmpf olt, %180, %150 : vector<4x128xf32>
    %182 = arith.andi %179, %181 : vector<4x128xi1>
    %183 = arith.select %182, %151, %147 : vector<4x128xi1>, vector<4x128xf32>
    %184 = vector.shape_cast %175 : vector<1x128xf32> to vector<1x128xf32>
    %185 = vector.broadcast %184 : vector<1x128xf32> to vector<4x128xf32>
    %186 = arith.select %182, %185, %150 : vector<4x128xi1>, vector<4x128xf32>
    %187 = vector.extract_strided_slice %38 {offsets = [16, 0], sizes = [4, 128], strides = [1, 1]} : vector<36x128xf32> to vector<4x128xf32>
    %c0_i32_48 = arith.constant 0 : i32
    %188 = vector.broadcast %c0_i32_48 : i32 to vector<1x128xi32>
    %189 = arith.addi %15, %188 : vector<1x128xi32>
    %c0_i32_49 = arith.constant 0 : i32
    %190 = vector.broadcast %c0_i32_49 : i32 to vector<1x128xi32>
    %191 = arith.addi %17, %190 : vector<1x128xi32>
    %c0_i32_50 = arith.constant 0 : i32
    %192 = vector.broadcast %c0_i32_50 : i32 to vector<1x128xi32>
    %193 = arith.cmpi sge, %189, %192 : vector<1x128xi32>
    %c16_i32_51 = arith.constant 16 : i32
    %194 = vector.broadcast %c16_i32_51 : i32 to vector<1x128xi32>
    %195 = arith.cmpi slt, %189, %194 : vector<1x128xi32>
    %196 = arith.andi %193, %195 : vector<1x128xi1>
    %c0_i32_52 = arith.constant 0 : i32
    %197 = vector.broadcast %c0_i32_52 : i32 to vector<1x128xi32>
    %198 = arith.cmpi sge, %191, %197 : vector<1x128xi32>
    %199 = arith.andi %196, %198 : vector<1x128xi1>
    %c16_i32_53 = arith.constant 16 : i32
    %200 = vector.broadcast %c16_i32_53 : i32 to vector<1x128xi32>
    %201 = arith.cmpi slt, %191, %200 : vector<1x128xi32>
    %202 = arith.andi %199, %201 : vector<1x128xi1>
    %cst_54 = arith.constant 0.000000e+00 : f32
    %203 = vector.broadcast %cst_54 : f32 to vector<1x128xf32>
    %204 = arith.addf %39, %203 : vector<1x128xf32>
    %205 = arith.subf %204, %9 : vector<1x128xf32>
    %206 = arith.mulf %205, %205 : vector<1x128xf32>
    %cst_55 = arith.constant 0.000000e+00 : f32
    %207 = vector.broadcast %cst_55 : f32 to vector<1x128xf32>
    %208 = arith.addf %40, %207 : vector<1x128xf32>
    %209 = arith.subf %208, %13 : vector<1x128xf32>
    %210 = arith.mulf %209, %209 : vector<1x128xf32>
    %211 = arith.addf %206, %210 : vector<1x128xf32>
    %cst_56 = arith.constant 0.000000e+00 : f32
    %212 = vector.broadcast %cst_56 : f32 to vector<4x128xf32>
    %213 = arith.cmpf one, %187, %212 : vector<4x128xf32>
    %214 = vector.broadcast %202 : vector<1x128xi1> to vector<4x128xi1>
    %215 = arith.andi %214, %213 : vector<4x128xi1>
    %216 = vector.broadcast %211 : vector<1x128xf32> to vector<4x128xf32>
    %217 = arith.cmpf olt, %216, %186 : vector<4x128xf32>
    %218 = arith.andi %215, %217 : vector<4x128xi1>
    %219 = arith.select %218, %187, %183 : vector<4x128xi1>, vector<4x128xf32>
    %220 = vector.shape_cast %211 : vector<1x128xf32> to vector<1x128xf32>
    %221 = vector.broadcast %220 : vector<1x128xf32> to vector<4x128xf32>
    %222 = arith.select %218, %221, %186 : vector<4x128xi1>, vector<4x128xf32>
    %223 = vector.extract_strided_slice %38 {offsets = [20, 0], sizes = [4, 128], strides = [1, 1]} : vector<36x128xf32> to vector<4x128xf32>
    %c1_i32_57 = arith.constant 1 : i32
    %224 = vector.broadcast %c1_i32_57 : i32 to vector<1x128xi32>
    %225 = arith.addi %15, %224 : vector<1x128xi32>
    %c0_i32_58 = arith.constant 0 : i32
    %226 = vector.broadcast %c0_i32_58 : i32 to vector<1x128xi32>
    %227 = arith.addi %17, %226 : vector<1x128xi32>
    %c0_i32_59 = arith.constant 0 : i32
    %228 = vector.broadcast %c0_i32_59 : i32 to vector<1x128xi32>
    %229 = arith.cmpi sge, %225, %228 : vector<1x128xi32>
    %c16_i32_60 = arith.constant 16 : i32
    %230 = vector.broadcast %c16_i32_60 : i32 to vector<1x128xi32>
    %231 = arith.cmpi slt, %225, %230 : vector<1x128xi32>
    %232 = arith.andi %229, %231 : vector<1x128xi1>
    %c0_i32_61 = arith.constant 0 : i32
    %233 = vector.broadcast %c0_i32_61 : i32 to vector<1x128xi32>
    %234 = arith.cmpi sge, %227, %233 : vector<1x128xi32>
    %235 = arith.andi %232, %234 : vector<1x128xi1>
    %c16_i32_62 = arith.constant 16 : i32
    %236 = vector.broadcast %c16_i32_62 : i32 to vector<1x128xi32>
    %237 = arith.cmpi slt, %227, %236 : vector<1x128xi32>
    %238 = arith.andi %235, %237 : vector<1x128xi1>
    %cst_63 = arith.constant 1.000000e+00 : f32
    %239 = vector.broadcast %cst_63 : f32 to vector<1x128xf32>
    %240 = arith.addf %39, %239 : vector<1x128xf32>
    %241 = arith.subf %240, %9 : vector<1x128xf32>
    %242 = arith.mulf %241, %241 : vector<1x128xf32>
    %cst_64 = arith.constant 0.000000e+00 : f32
    %243 = vector.broadcast %cst_64 : f32 to vector<1x128xf32>
    %244 = arith.addf %40, %243 : vector<1x128xf32>
    %245 = arith.subf %244, %13 : vector<1x128xf32>
    %246 = arith.mulf %245, %245 : vector<1x128xf32>
    %247 = arith.addf %242, %246 : vector<1x128xf32>
    %cst_65 = arith.constant 0.000000e+00 : f32
    %248 = vector.broadcast %cst_65 : f32 to vector<4x128xf32>
    %249 = arith.cmpf one, %223, %248 : vector<4x128xf32>
    %250 = vector.broadcast %238 : vector<1x128xi1> to vector<4x128xi1>
    %251 = arith.andi %250, %249 : vector<4x128xi1>
    %252 = vector.broadcast %247 : vector<1x128xf32> to vector<4x128xf32>
    %253 = arith.cmpf olt, %252, %222 : vector<4x128xf32>
    %254 = arith.andi %251, %253 : vector<4x128xi1>
    %255 = arith.select %254, %223, %219 : vector<4x128xi1>, vector<4x128xf32>
    %256 = vector.shape_cast %247 : vector<1x128xf32> to vector<1x128xf32>
    %257 = vector.broadcast %256 : vector<1x128xf32> to vector<4x128xf32>
    %258 = arith.select %254, %257, %222 : vector<4x128xi1>, vector<4x128xf32>
    %259 = vector.extract_strided_slice %38 {offsets = [24, 0], sizes = [4, 128], strides = [1, 1]} : vector<36x128xf32> to vector<4x128xf32>
    %c-1_i32_66 = arith.constant -1 : i32
    %260 = vector.broadcast %c-1_i32_66 : i32 to vector<1x128xi32>
    %261 = arith.addi %15, %260 : vector<1x128xi32>
    %c1_i32_67 = arith.constant 1 : i32
    %262 = vector.broadcast %c1_i32_67 : i32 to vector<1x128xi32>
    %263 = arith.addi %17, %262 : vector<1x128xi32>
    %c0_i32_68 = arith.constant 0 : i32
    %264 = vector.broadcast %c0_i32_68 : i32 to vector<1x128xi32>
    %265 = arith.cmpi sge, %261, %264 : vector<1x128xi32>
    %c16_i32_69 = arith.constant 16 : i32
    %266 = vector.broadcast %c16_i32_69 : i32 to vector<1x128xi32>
    %267 = arith.cmpi slt, %261, %266 : vector<1x128xi32>
    %268 = arith.andi %265, %267 : vector<1x128xi1>
    %c0_i32_70 = arith.constant 0 : i32
    %269 = vector.broadcast %c0_i32_70 : i32 to vector<1x128xi32>
    %270 = arith.cmpi sge, %263, %269 : vector<1x128xi32>
    %271 = arith.andi %268, %270 : vector<1x128xi1>
    %c16_i32_71 = arith.constant 16 : i32
    %272 = vector.broadcast %c16_i32_71 : i32 to vector<1x128xi32>
    %273 = arith.cmpi slt, %263, %272 : vector<1x128xi32>
    %274 = arith.andi %271, %273 : vector<1x128xi1>
    %cst_72 = arith.constant -1.000000e+00 : f32
    %275 = vector.broadcast %cst_72 : f32 to vector<1x128xf32>
    %276 = arith.addf %39, %275 : vector<1x128xf32>
    %277 = arith.subf %276, %9 : vector<1x128xf32>
    %278 = arith.mulf %277, %277 : vector<1x128xf32>
    %cst_73 = arith.constant 1.000000e+00 : f32
    %279 = vector.broadcast %cst_73 : f32 to vector<1x128xf32>
    %280 = arith.addf %40, %279 : vector<1x128xf32>
    %281 = arith.subf %280, %13 : vector<1x128xf32>
    %282 = arith.mulf %281, %281 : vector<1x128xf32>
    %283 = arith.addf %278, %282 : vector<1x128xf32>
    %cst_74 = arith.constant 0.000000e+00 : f32
    %284 = vector.broadcast %cst_74 : f32 to vector<4x128xf32>
    %285 = arith.cmpf one, %259, %284 : vector<4x128xf32>
    %286 = vector.broadcast %274 : vector<1x128xi1> to vector<4x128xi1>
    %287 = arith.andi %286, %285 : vector<4x128xi1>
    %288 = vector.broadcast %283 : vector<1x128xf32> to vector<4x128xf32>
    %289 = arith.cmpf olt, %288, %258 : vector<4x128xf32>
    %290 = arith.andi %287, %289 : vector<4x128xi1>
    %291 = arith.select %290, %259, %255 : vector<4x128xi1>, vector<4x128xf32>
    %292 = vector.shape_cast %283 : vector<1x128xf32> to vector<1x128xf32>
    %293 = vector.broadcast %292 : vector<1x128xf32> to vector<4x128xf32>
    %294 = arith.select %290, %293, %258 : vector<4x128xi1>, vector<4x128xf32>
    %295 = vector.extract_strided_slice %38 {offsets = [28, 0], sizes = [4, 128], strides = [1, 1]} : vector<36x128xf32> to vector<4x128xf32>
    %c0_i32_75 = arith.constant 0 : i32
    %296 = vector.broadcast %c0_i32_75 : i32 to vector<1x128xi32>
    %297 = arith.addi %15, %296 : vector<1x128xi32>
    %c1_i32_76 = arith.constant 1 : i32
    %298 = vector.broadcast %c1_i32_76 : i32 to vector<1x128xi32>
    %299 = arith.addi %17, %298 : vector<1x128xi32>
    %c0_i32_77 = arith.constant 0 : i32
    %300 = vector.broadcast %c0_i32_77 : i32 to vector<1x128xi32>
    %301 = arith.cmpi sge, %297, %300 : vector<1x128xi32>
    %c16_i32_78 = arith.constant 16 : i32
    %302 = vector.broadcast %c16_i32_78 : i32 to vector<1x128xi32>
    %303 = arith.cmpi slt, %297, %302 : vector<1x128xi32>
    %304 = arith.andi %301, %303 : vector<1x128xi1>
    %c0_i32_79 = arith.constant 0 : i32
    %305 = vector.broadcast %c0_i32_79 : i32 to vector<1x128xi32>
    %306 = arith.cmpi sge, %299, %305 : vector<1x128xi32>
    %307 = arith.andi %304, %306 : vector<1x128xi1>
    %c16_i32_80 = arith.constant 16 : i32
    %308 = vector.broadcast %c16_i32_80 : i32 to vector<1x128xi32>
    %309 = arith.cmpi slt, %299, %308 : vector<1x128xi32>
    %310 = arith.andi %307, %309 : vector<1x128xi1>
    %cst_81 = arith.constant 0.000000e+00 : f32
    %311 = vector.broadcast %cst_81 : f32 to vector<1x128xf32>
    %312 = arith.addf %39, %311 : vector<1x128xf32>
    %313 = arith.subf %312, %9 : vector<1x128xf32>
    %314 = arith.mulf %313, %313 : vector<1x128xf32>
    %cst_82 = arith.constant 1.000000e+00 : f32
    %315 = vector.broadcast %cst_82 : f32 to vector<1x128xf32>
    %316 = arith.addf %40, %315 : vector<1x128xf32>
    %317 = arith.subf %316, %13 : vector<1x128xf32>
    %318 = arith.mulf %317, %317 : vector<1x128xf32>
    %319 = arith.addf %314, %318 : vector<1x128xf32>
    %cst_83 = arith.constant 0.000000e+00 : f32
    %320 = vector.broadcast %cst_83 : f32 to vector<4x128xf32>
    %321 = arith.cmpf one, %295, %320 : vector<4x128xf32>
    %322 = vector.broadcast %310 : vector<1x128xi1> to vector<4x128xi1>
    %323 = arith.andi %322, %321 : vector<4x128xi1>
    %324 = vector.broadcast %319 : vector<1x128xf32> to vector<4x128xf32>
    %325 = arith.cmpf olt, %324, %294 : vector<4x128xf32>
    %326 = arith.andi %323, %325 : vector<4x128xi1>
    %327 = arith.select %326, %295, %291 : vector<4x128xi1>, vector<4x128xf32>
    %328 = vector.shape_cast %319 : vector<1x128xf32> to vector<1x128xf32>
    %329 = vector.broadcast %328 : vector<1x128xf32> to vector<4x128xf32>
    %330 = arith.select %326, %329, %294 : vector<4x128xi1>, vector<4x128xf32>
    %331 = vector.extract_strided_slice %38 {offsets = [32, 0], sizes = [4, 128], strides = [1, 1]} : vector<36x128xf32> to vector<4x128xf32>
    %c1_i32_84 = arith.constant 1 : i32
    %332 = vector.broadcast %c1_i32_84 : i32 to vector<1x128xi32>
    %333 = arith.addi %15, %332 : vector<1x128xi32>
    %c1_i32_85 = arith.constant 1 : i32
    %334 = vector.broadcast %c1_i32_85 : i32 to vector<1x128xi32>
    %335 = arith.addi %17, %334 : vector<1x128xi32>
    %c0_i32_86 = arith.constant 0 : i32
    %336 = vector.broadcast %c0_i32_86 : i32 to vector<1x128xi32>
    %337 = arith.cmpi sge, %333, %336 : vector<1x128xi32>
    %c16_i32_87 = arith.constant 16 : i32
    %338 = vector.broadcast %c16_i32_87 : i32 to vector<1x128xi32>
    %339 = arith.cmpi slt, %333, %338 : vector<1x128xi32>
    %340 = arith.andi %337, %339 : vector<1x128xi1>
    %c0_i32_88 = arith.constant 0 : i32
    %341 = vector.broadcast %c0_i32_88 : i32 to vector<1x128xi32>
    %342 = arith.cmpi sge, %335, %341 : vector<1x128xi32>
    %343 = arith.andi %340, %342 : vector<1x128xi1>
    %c16_i32_89 = arith.constant 16 : i32
    %344 = vector.broadcast %c16_i32_89 : i32 to vector<1x128xi32>
    %345 = arith.cmpi slt, %335, %344 : vector<1x128xi32>
    %346 = arith.andi %343, %345 : vector<1x128xi1>
    %cst_90 = arith.constant 1.000000e+00 : f32
    %347 = vector.broadcast %cst_90 : f32 to vector<1x128xf32>
    %348 = arith.addf %39, %347 : vector<1x128xf32>
    %349 = arith.subf %348, %9 : vector<1x128xf32>
    %350 = arith.mulf %349, %349 : vector<1x128xf32>
    %cst_91 = arith.constant 1.000000e+00 : f32
    %351 = vector.broadcast %cst_91 : f32 to vector<1x128xf32>
    %352 = arith.addf %40, %351 : vector<1x128xf32>
    %353 = arith.subf %352, %13 : vector<1x128xf32>
    %354 = arith.mulf %353, %353 : vector<1x128xf32>
    %355 = arith.addf %350, %354 : vector<1x128xf32>
    %cst_92 = arith.constant 0.000000e+00 : f32
    %356 = vector.broadcast %cst_92 : f32 to vector<4x128xf32>
    %357 = arith.cmpf one, %331, %356 : vector<4x128xf32>
    %358 = vector.broadcast %346 : vector<1x128xi1> to vector<4x128xi1>
    %359 = arith.andi %358, %357 : vector<4x128xi1>
    %360 = vector.broadcast %355 : vector<1x128xf32> to vector<4x128xf32>
    %361 = arith.cmpf olt, %360, %330 : vector<4x128xf32>
    %362 = arith.andi %359, %361 : vector<4x128xi1>
    %363 = arith.select %362, %331, %327 : vector<4x128xi1>, vector<4x128xf32>
    %c0_93 = arith.constant 0 : index
    %c0_94 = arith.constant 0 : index
    %c0_95 = arith.constant 0 : index
    %364 = vector.load %arg4[%c0_93, %c0_94, %c0_95] : memref<1x4x128xf32, #tpu.memory_space<vmem>>, vector<1x4x128xf32>
    %365 = vector.shape_cast %364 : vector<1x4x128xf32> to vector<4x128xf32>
    %366 = vector.shape_cast %363 : vector<4x128xf32> to vector<1x4x128xf32>
    tpu.vector_store %arg4[%c0_93, %c0_94, %c0_95], %366 {strides = array<i32>} : memref<1x4x128xf32, #tpu.memory_space<vmem>>, vector<1x4x128xf32>,
    return
  }
  func.func @transform_0(%arg0: i32, %arg1: i32) -> (i32, i32, i32) {
    %c0_i32 = arith.constant 0 : i32
    %c0_i32_0 = arith.constant 0 : i32
    %c0_i32_1 = arith.constant 0 : i32
    return %arg0, %c0_i32, %c0_i32_0 : i32, i32, i32
  }
  func.func @transform_1(%arg0: i32, %arg1: i32) -> (i32, i32, i32) {
    %c0_i32 = arith.constant 0 : i32
    %c0_i32_0 = arith.constant 0 : i32
    return %arg0, %c0_i32, %arg1 : i32, i32, i32
  }
  func.func @transform_2(%arg0: i32, %arg1: i32) -> (i32, i32, i32) {
    %c0_i32 = arith.constant 0 : i32
    %c0_i32_0 = arith.constant 0 : i32
    return %arg0, %c0_i32, %arg1 : i32, i32, i32
  }
}

</mosaic_0001>

<llo_original>
// kernel: tpu_custom_call.1
$region0: #{tpu_custom_call.1}
  #allocation0 [shape = 'u32[]', space=smem, size = 0x4, offset = 0x4, fixed_abs, tag = 'smem constant byte address 0x4 - core index']
  #allocation1 [shape = 'u32[144,128]{1,0:T(1,128)}', space=vmem, size = 0x12000, scoped, tag = 'internal scratch']
  %s0 = inlined_call_operand.vmem [shape: f32[2,36,324], index: 0, kind: input, shape index: {}]
  %s1 = inlined_call_operand.vmem [shape: f32[2,2,128], index: 1, kind: input, shape index: {}]
  %s2 = inlined_call_operand.hbm [shape: f32[2,4,128], index: 2, kind: output, shape index: {}]
  %s3 = sld [smem:[#allocation0]]
  $region41: #{tpu_custom_call.1} parent=0
    _
  %s5 = ssub.s32 1, %s3
  %s6 = scalar_select 0, %s5, %s3
  $region1: #{tpu_custom_call.1} parent=0
    #allocation2 [shape = 'u8[4096]{0}', space=vmem, size = 0x1000, scoped, tag = 'output window, operand 0']
    #allocation3 [shape = 's32[2]{0}', space=sflag, size = 0x8, scoped, tag = 'scoped memory for tpu_custom_call.1']
    %7 = vsyncpa [#allocation3], 0
    %s8 = scalar_lea.sflag [#allocation3], 1
    %9 = vsyncpa %s8, 0
    loop: start=0, step=1, limit=4
    $region2: #{tpu_custom_call.1} parent=1 // loop_pre_header
      _
    $region3: #{tpu_custom_call.1} parent=1 // loop_header
      %s11 = sphi 0, %s15
      %p12 = scmp.ge.s32.totalorder %s11, 4
      %s18 = sphi 0, %s30
      %s19 = sphi 0, %s26
      %s20 = sphi 0, %s18
      %s21 = sphi 0, %s19
      %s22 = sphi 0, %s20
      %s23 = sphi 0, %s21
      %s33 = sphi 0, %s35
      %s36 = sphi 0, %s33
      %s37 = sphi 0, %s36
      %s53 = sphi 0, %s37
      %s61 = sphi 0, %s63
      %s64 = sphi 0, %s61
      %s65 = sphi 0, %s64
      %s81 = sphi 0, %s65
      %s89 = sphi 0, %s91
      %s92 = sphi 0, %s89
      %s93 = sphi 0, %s92
      %s109 = sphi 0, %s93
    $region4: #{tpu_custom_call.1} parent=1 // loop_header_branch
      %14 = sbr.rel (%p12) target = $region8
    $region5: #{tpu_custom_call.1} parent=1 // loop_body
      %s16 = ssub.s32 %s11, 1
      %s17 = ssub.s32 %s11, 2
      %s24 = sadd.s32 1, %s19
      %p25 = scmp.ge.s32.totalorder %s24, 1
      %s26 = scalar_select %p25, 0, %s24
      %s27 = sadd.s32 1, %s18
      %s28 = scalar_select %p25, %s27, %s18
      %p29 = scmp.ge.s32.totalorder %s28, 2
      %s30 = scalar_select %p29, 0, %s28
      %s31 = ssub.s32 %s18, %s30
      %p32 = scmp.eq.s32.totalorder %s31, 0
      %s34 = sadd.s32 %s33, 1
      %s35 = scalar_select %p32, %s33, %s34
      %p38 = pneg %p32
      %p39 = scmp.eq.s32.totalorder %s11, 1
      %p40 = por %p38, %p39
      %p41 = scmp.ne.s32.totalorder %s33, %s36
      %p42 = scmp.eq.s32.totalorder %s11, 0
      %p43 = por %p41, %p42
      %p44 = scmp.ne.s32.totalorder %s33, %s36
      %p45 = scmp.eq.s32.totalorder %s16, 1
      %p46 = por %p44, %p45
      %p47 = scmp.ne.s32.totalorder %s36, %s37
      %p48 = scmp.eq.s32.totalorder %s16, 0
      %p49 = por %p47, %p48
      %p50 = scmp.ne.s32.totalorder %s36, %s37
      %p51 = scmp.eq.s32.totalorder %s17, 1
      %p52 = por %p50, %p51
      %p54 = scmp.ne.s32.totalorder %s37, %s53
      %p55 = scmp.eq.s32.totalorder %s17, 0
      %p56 = por %p54, %p55
      %s57 = ssub.s32 %s18, %s30
      %s58 = ssub.s32 %s19, %s26
      %s59 = sor.u32 %s57, %s58
      %p60 = scmp.eq.s32.totalorder %s59, 0
      %s62 = sadd.s32 %s61, 1
      %s63 = scalar_select %p60, %s61, %s62
      %p66 = pneg %p60
      %p67 = scmp.eq.s32.totalorder %s11, 1
      %p68 = por %p66, %p67
      %p69 = scmp.ne.s32.totalorder %s61, %s64
      %p70 = scmp.eq.s32.totalorder %s11, 0
      %p71 = por %p69, %p70
      %p72 = scmp.ne.s32.totalorder %s61, %s64
      %p73 = scmp.eq.s32.totalorder %s16, 1
      %p74 = por %p72, %p73
      %p75 = scmp.ne.s32.totalorder %s64, %s65
      %p76 = scmp.eq.s32.totalorder %s16, 0
      %p77 = por %p75, %p76
      %p78 = scmp.ne.s32.totalorder %s64, %s65
      %p79 = scmp.eq.s32.totalorder %s17, 1
      %p80 = por %p78, %p79
      %p82 = scmp.ne.s32.totalorder %s65, %s81
      %p83 = scmp.eq.s32.totalorder %s17, 0
      %p84 = por %p82, %p83
      %s85 = ssub.s32 %s18, %s30
      %s86 = ssub.s32 %s19, %s26
      %s87 = sor.u32 %s85, %s86
      %p88 = scmp.eq.s32.totalorder %s87, 0
      %s90 = sadd.s32 %s89, 1
      %s91 = scalar_select %p88, %s89, %s90
      %p94 = pneg %p88
      %p95 = scmp.eq.s32.totalorder %s11, 1
      %p96 = por %p94, %p95
      %p97 = scmp.ne.s32.totalorder %s89, %s92
      %p98 = scmp.eq.s32.totalorder %s11, 0
      %p99 = por %p97, %p98
      %p100 = scmp.ne.s32.totalorder %s89, %s92
      %p101 = scmp.eq.s32.totalorder %s16, 1
      %p102 = por %p100, %p101
      %p103 = scmp.ne.s32.totalorder %s92, %s93
      %p104 = scmp.eq.s32.totalorder %s16, 0
      %p105 = por %p103, %p104
      %p106 = scmp.ne.s32.totalorder %s92, %s93
      %p107 = scmp.eq.s32.totalorder %s17, 1
      %p108 = por %p106, %p107
      %p110 = scmp.ne.s32.totalorder %s93, %s109
      %p111 = scmp.eq.s32.totalorder %s17, 0
      %p112 = por %p110, %p111
      %p113 = scmp.le.s32.totalorder 1, %s11
      %p114 = scmp.lt.s32.totalorder %s11, 3
      %p115 = pnand %p113, %p114
      %p116 = pneg %p115
      // Predicated region
      $region9: #{tpu_custom_call.1} parent=5 // pred_check
        _
      $region10: #{tpu_custom_call.1} parent=5 // pred_check_branch
        %118 = sbr.rel (%p115) target = $region12
      $region11: #{tpu_custom_call.1} parent=5 // pred_region
        %s119 = ssub.s32 %s11, 1
      $region12: #{tpu_custom_call.1} parent=5 // pred_fallthru
        _
      %p120 = scmp.lt.s32.totalorder %s11, 2
      // Predicated region
      $region13: #{tpu_custom_call.1} parent=5 // pred_check
        %p121 = pneg %p120
      $region14: #{tpu_custom_call.1} parent=5 // pred_check_branch
        %123 = sbr.rel (%p121) target = $region16
      $region15: #{tpu_custom_call.1} parent=5 // pred_region
        // Predicated region
        $region17: #{tpu_custom_call.1} parent=15 // pred_check
          %p124 = pneg %p43
        $region18: #{tpu_custom_call.1} parent=15 // pred_check_branch
          %126 = sbr.rel (%p124) target = $region20
        $region19: #{tpu_custom_call.1} parent=15 // pred_region
          %p127 = scmp.lt.s32.totalorder %s18, 1
          %s128 = scalar_select %p127, %s18, 1
          %s129 = smul.addr %s128, 15
          %s130 = smul.addr %s129, 8
          %s131 = scalar_lea.vmem %s0, %s130
        $region20: #{tpu_custom_call.1} parent=15 // pred_fallthru
          _
        // Predicated region
        $region21: #{tpu_custom_call.1} parent=15 // pred_check
          %p132 = pneg %p71
        $region22: #{tpu_custom_call.1} parent=15 // pred_check_branch
          %134 = sbr.rel (%p132) target = $region24
        $region23: #{tpu_custom_call.1} parent=15 // pred_region
          %p135 = scmp.lt.s32.totalorder %s18, 1
          %s136 = scalar_select %p135, %s18, 1
          %p137 = scmp.lt.s32.totalorder %s19, 0
          %s138 = scalar_select %p137, %s19, 0
          %s139 = sadd.s32 %s138, %s136
          %s140 = smul.addr %s139, 2
          %s141 = scalar_lea.vmem %s1, %s140
        $region24: #{tpu_custom_call.1} parent=15 // pred_fallthru
          _
      $region16: #{tpu_custom_call.1} parent=5 // pred_fallthru
        _
      %p142 = scmp.le.s32.totalorder 1, %s11
      %p143 = scmp.lt.s32.totalorder %s11, 3
      %p144 = pnand %p142, %p143
      %p145 = pneg %p144
      // Predicated region
      $region25: #{tpu_custom_call.1} parent=5 // pred_check
        _
      $region26: #{tpu_custom_call.1} parent=5 // pred_check_branch
        %147 = sbr.rel (%p144) target = $region28
      $region27: #{tpu_custom_call.1} parent=5 // pred_region
        %s148 = ssub.s32 %s11, 1
        %p149 = scmp.lt.s32.totalorder %s20, 1
        %s150 = scalar_select %p149, %s20, 1
        %s151 = smul.addr %s150, 15
        %s152 = smul.addr %s151, 8
        %s153 = scalar_lea.vmem %s0, %s152
        %p154 = pneg %p49
        %p155 = pneg %p46
        %p156 = scmp.lt.s32.totalorder %s20, 1
        %s157 = scalar_select %p156, %s20, 1
        %p158 = scmp.lt.s32.totalorder %s21, 0
        %s159 = scalar_select %p158, %s21, 0
        %s160 = sadd.s32 %s159, %s157
        %s161 = smul.addr %s160, 2
        %s162 = scalar_lea.vmem %s1, %s161
        %p163 = pneg %p77
        %p164 = pneg %p74
        %p165 = pneg %p105
        %p166 = pneg %p102
        %s167 = sand.u32 %s92, 1
        %s168 = scalar_lea.sflag [#allocation3], %s167
        %s169 = sand.u32 %s92, 1
        %s170 = smul.addr %s169, 4
        %s171 = scalar_lea.vmem [#allocation2], %s170
        %p172 = scmp.lt.s32.totalorder %s20, 1
        %s173 = scalar_select %p172, %s20, 1
        %s174 = smul.addr %s173, 15
        %s175 = smul.addr %s174, 8
        %s176 = scalar_lea.vmem %s0, %s175
        %p177 = scmp.lt.s32.totalorder %s20, 1
        %s178 = scalar_select %p177, %s20, 1
        %p179 = scmp.lt.s32.totalorder %s21, 0
        %s180 = scalar_select %p179, %s21, 0
        %s181 = sadd.s32 %s180, %s178
        %s182 = smul.addr %s181, 2
        %s183 = scalar_lea.vmem %s1, %s182
        %v184 = vld [vmem:[%s176] sm:$0xff]
        %v185 = vld [vmem:[%s176 + $0x8] sm:$0xff]
        %v186 = vld [vmem:[%s176 + $0x10] sm:$0xff]
        %v187 = vld [vmem:[%s176 + $0x18] sm:$0xff]
        %v188 = vld [vmem:[%s176 + $0x20] sm:$0xff]
        %v189 = vld [vmem:[%s176 + $0x28] sm:$0xff]
        %v190 = vld [vmem:[%s176 + $0x30] sm:$0xff]
        %v191 = vld [vmem:[%s176 + $0x38] sm:$0xff]
        %v192 = vld [vmem:[%s176 + $0x40] sm:$0xff]
        %v193 = vld [vmem:[%s176 + $0x48] sm:$0xff]
        %v194 = vld [vmem:[%s176 + $0x50] sm:$0xff]
        %v195 = vld [vmem:[%s176 + $0x58] sm:$0xff]
        %v196 = vld [vmem:[%s176 + $0x60] sm:$0xf]
        %v197 = vld [vmem:[%s176 + $0x68] sm:$0xf]
        %v198 = vld [vmem:[%s176 + $0x70] sm:$0xf]
        %v199 = vld [vmem:[%s183] sm:$0x3]
        %v200 = vadd.f32 %v199, 1.0
        %v201 = vmul.f32 %v200, 7.5
        %v202 = vcvt.f32.s32.ties.to.even %v201
        %v203 = vadd.s32 %v202, 1
        %vm204 = vcmp.gt.s32.totalorder %v203, 0
        %v205 = vsel %vm204, %v203, 0
        %vm206 = vcmp.lt.s32.totalorder %v205, 17
        %v207 = vsel %vm206, %v205, 17
        %v208 = vmul.u32 %v207, 18
        %v209 = vrot.slane %v207, 7
        %v210 = vadd.s32 %v208, %v209
        %v211 = vlaneseq
        %v212 = vshrl.u32 %v211, 7
        %v213 = vadd.s32 %v212, 8
        %v214 = vadd.s32 %v212, 16
        %v215 = vadd.s32 %v212, 24
        %v216 = vadd.s32 %v212, 32
        %v217 = vadd.s32 %v212, 40
        %v218 = vadd.s32 %v212, 48
        %v219 = vadd.s32 %v212, 56
        %v220 = vadd.s32 %v212, 64
        %v221 = vadd.s32 %v212, 72
        %v222 = vadd.s32 %v212, 80
        %v223 = vadd.s32 %v212, 88
        %v224 = vadd.s32 %v212, 96
        %v225 = vadd.s32 %v212, 104
        %v226 = vadd.s32 %v212, 112
        %v227 = vadd.s32 %v212, 120
        %v228 = vadd.s32 %v212, 128
        %v229 = vadd.s32 %v212, 136
        %v230 = vadd.s32 %v212, 144
        %v231 = vadd.s32 %v212, 152
        %v232 = vadd.s32 %v212, 160
        %v233 = vadd.s32 %v212, 168
        %v234 = vadd.s32 %v212, 176
        %v235 = vadd.s32 %v212, 184
        %v236 = vadd.s32 %v212, 192
        %v237 = vadd.s32 %v212, 200
        %v238 = vadd.s32 %v212, 208
        %v239 = vadd.s32 %v212, 216
        %v240 = vadd.s32 %v212, 224
        %v241 = vadd.s32 %v212, 232
        %v242 = vadd.s32 %v212, 240
        %v243 = vadd.s32 %v212, 248
        %v244 = vadd.s32 %v212, 256
        %v245 = vadd.s32 %v212, 264
        %v246 = vadd.s32 %v212, 272
        %v247 = vadd.s32 %v212, 280
        %v248 = vadd.s32 %v212, 288
        %v249 = vadd.s32 %v212, 296
        %v250 = vadd.s32 %v212, 304
        %v251 = vadd.s32 %v212, 312
        %v252 = vadd.s32 %v212, 320
        %v253 = vlaneseq
        %v254 = vshrl.u32 %v253, 7
        %v255 = vsub.s32 1, %v254
        %v256 = vrot.slane %v210, %v255
        %vm257 = vcmp.eq.s32.totalorder %v212, %v256
        %vm258 = vcmp.eq.s32.totalorder %v213, %v256
        %vm259 = vcmp.eq.s32.totalorder %v214, %v256
        %vm260 = vcmp.eq.s32.totalorder %v215, %v256
        %vm261 = vcmp.eq.s32.totalorder %v216, %v256
        %vm262 = vcmp.eq.s32.totalorder %v217, %v256
        %vm263 = vcmp.eq.s32.totalorder %v218, %v256
        %vm264 = vcmp.eq.s32.totalorder %v219, %v256
        %vm265 = vcmp.eq.s32.totalorder %v220, %v256
        %vm266 = vcmp.eq.s32.totalorder %v221, %v256
        %vm267 = vcmp.eq.s32.totalorder %v222, %v256
        %vm268 = vcmp.eq.s32.totalorder %v223, %v256
        %vm269 = vcmp.eq.s32.totalorder %v224, %v256
        %vm270 = vcmp.eq.s32.totalorder %v225, %v256
        %vm271 = vcmp.eq.s32.totalorder %v226, %v256
        %vm272 = vcmp.eq.s32.totalorder %v227, %v256
        %vm273 = vcmp.eq.s32.totalorder %v228, %v256
        %vm274 = vcmp.eq.s32.totalorder %v229, %v256
        %vm275 = vcmp.eq.s32.totalorder %v230, %v256
        %vm276 = vcmp.eq.s32.totalorder %v231, %v256
        %vm277 = vcmp.eq.s32.totalorder %v232, %v256
        %vm278 = vcmp.eq.s32.totalorder %v233, %v256
        %vm279 = vcmp.eq.s32.totalorder %v234, %v256
        %vm280 = vcmp.eq.s32.totalorder %v235, %v256
        %vm281 = vcmp.eq.s32.totalorder %v236, %v256
        %vm282 = vcmp.eq.s32.totalorder %v237, %v256
        %vm283 = vcmp.eq.s32.totalorder %v238, %v256
        %vm284 = vcmp.eq.s32.totalorder %v239, %v256
        %vm285 = vcmp.eq.s32.totalorder %v240, %v256
        %vm286 = vcmp.eq.s32.totalorder %v241, %v256
        %vm287 = vcmp.eq.s32.totalorder %v242, %v256
        %vm288 = vcmp.eq.s32.totalorder %v243, %v256
        %vm289 = vcmp.eq.s32.totalorder %v244, %v256
        %vm290 = vcmp.eq.s32.totalorder %v245, %v256
        %vm291 = vcmp.eq.s32.totalorder %v246, %v256
        %vm292 = vcmp.eq.s32.totalorder %v247, %v256
        %vm293 = vcmp.eq.s32.totalorder %v248, %v256
        %vm294 = vcmp.eq.s32.totalorder %v249, %v256
        %vm295 = vcmp.eq.s32.totalorder %v250, %v256
        %vm296 = vcmp.eq.s32.totalorder %v251, %v256
        %vm297 = vcmp.eq.s32.totalorder %v252, %v256
        %v298 = vsel %vm257, 1, 0
        %v299 = vsel %vm258, 1, 0
        %v300 = vsel %vm259, 1, 0
        %v301 = vsel %vm260, 1, 0
        %v302 = vsel %vm261, 1, 0
        %v303 = vsel %vm262, 1, 0
        %v304 = vsel %vm263, 1, 0
        %v305 = vsel %vm264, 1, 0
        %v306 = vsel %vm265, 1, 0
        %v307 = vsel %vm266, 1, 0
        %v308 = vsel %vm267, 1, 0
        %v309 = vsel %vm268, 1, 0
        %v310 = vsel %vm269, 1, 0
        %v311 = vsel %vm270, 1, 0
        %v312 = vsel %vm271, 1, 0
        %v313 = vsel %vm272, 1, 0
        %v314 = vsel %vm273, 1, 0
        %v315 = vsel %vm274, 1, 0
        %v316 = vsel %vm275, 1, 0
        %v317 = vsel %vm276, 1, 0
        %v318 = vsel %vm277, 1, 0
        %v319 = vsel %vm278, 1, 0
        %v320 = vsel %vm279, 1, 0
        %v321 = vsel %vm280, 1, 0
        %v322 = vsel %vm281, 1, 0
        %v323 = vsel %vm282, 1, 0
        %v324 = vsel %vm283, 1, 0
        %v325 = vsel %vm284, 1, 0
        %v326 = vsel %vm285, 1, 0
        %v327 = vsel %vm286, 1, 0
        %v328 = vsel %vm287, 1, 0
        %v329 = vsel %vm288, 1, 0
        %v330 = vsel %vm289, 1, 0
        %v331 = vsel %vm290, 1, 0
        %v332 = vsel %vm291, 1, 0
        %v333 = vsel %vm292, 1, 0
        %v334 = vsel %vm293, 1, 0
        %v335 = vsel %vm294, 1, 0
        %v336 = vsel %vm295, 1, 0
        %v337 = vsel %vm296, 1, 0
        %v338 = vsel %vm297, 1, 0
        %v339 = vcvt.s32.f32 %v298
        %v340 = vcvt.s32.f32 %v299
        %v341 = vcvt.s32.f32 %v300
        %v342 = vcvt.s32.f32 %v301
        %v343 = vcvt.s32.f32 %v302
        %v344 = vcvt.s32.f32 %v303
        %v345 = vcvt.s32.f32 %v304
        %v346 = vcvt.s32.f32 %v305
        %v347 = vcvt.s32.f32 %v306
        %v348 = vcvt.s32.f32 %v307
        %v349 = vcvt.s32.f32 %v308
        %v350 = vcvt.s32.f32 %v309
        %v351 = vcvt.s32.f32 %v310
        %v352 = vcvt.s32.f32 %v311
        %v353 = vcvt.s32.f32 %v312
        %v354 = vcvt.s32.f32 %v313
        %v355 = vcvt.s32.f32 %v314
        %v356 = vcvt.s32.f32 %v315
        %v357 = vcvt.s32.f32 %v316
        %v358 = vcvt.s32.f32 %v317
        %v359 = vcvt.s32.f32 %v318
        %v360 = vcvt.s32.f32 %v319
        %v361 = vcvt.s32.f32 %v320
        %v362 = vcvt.s32.f32 %v321
        %v363 = vcvt.s32.f32 %v322
        %v364 = vcvt.s32.f32 %v323
        %v365 = vcvt.s32.f32 %v324
        %v366 = vcvt.s32.f32 %v325
        %v367 = vcvt.s32.f32 %v326
        %v368 = vcvt.s32.f32 %v327
        %v369 = vcvt.s32.f32 %v328
        %v370 = vcvt.s32.f32 %v329
        %v371 = vcvt.s32.f32 %v330
        %v372 = vcvt.s32.f32 %v331
        %v373 = vcvt.s32.f32 %v332
        %v374 = vcvt.s32.f32 %v333
        %v375 = vcvt.s32.f32 %v334
        %v376 = vcvt.s32.f32 %v335
        %v377 = vcvt.s32.f32 %v336
        %v378 = vcvt.s32.f32 %v337
        %v379 = vcvt.s32.f32 %v338
        %vm380 = vcmask 556032
        %v382 = vsel %vm380, %v186, 0
        %v385 = vsel %vm380, %v189, 0
        %v388 = vsel %vm380, %v192, 0
        %v391 = vsel %vm380, %v195, 0
        %v394 = vsel %vm380, %v198, 0
        %vm396 = vcmask 1043456
        %v398 = vsel %vm396, %v379, 0
        %400 = vmatprep.subr.mxu0 0.0
        %401 = vmatpush1.msra.mxu0 %v354
        %402 = vmatprep.subr.mxu0 0.0
        %403 = vmatpush1.msra.mxu0 %v353
        %404 = vmatprep.subr.mxu0 0.0
        %405 = vmatpush1.msra.mxu0 %v352
        %406 = vmatprep.subr.mxu0 0.0
        %407 = vmatpush1.msra.mxu0 %v351
        %408 = vmatprep.subr.mxu0 0.0
        %409 = vmatpush1.msra.mxu0 %v350
        %410 = vmatprep.subr.mxu0 0.0
        %411 = vmatpush1.msra.mxu0 %v349
        %412 = vmatprep.subr.mxu0 0.0
        %413 = vmatpush1.msra.mxu0 %v348
        %414 = vmatprep.subr.mxu0 0.0
        %415 = vmatpush1.msra.mxu0 %v347
        %416 = vmatprep.subr.mxu0 0.0
        %417 = vmatpush1.msra.mxu0 %v346
        %418 = vmatprep.subr.mxu0 0.0
        %419 = vmatpush1.msra.mxu0 %v345
        %420 = vmatprep.subr.mxu0 0.0
        %421 = vmatpush1.msra.mxu0 %v344
        %422 = vmatprep.subr.mxu0 0.0
        %423 = vmatpush1.msra.mxu0 %v343
        %424 = vmatprep.subr.mxu0 0.0
        %425 = vmatpush1.msra.mxu0 %v342
        %426 = vmatprep.subr.mxu0 0.0
        %427 = vmatpush1.msra.mxu0 %v341
        %428 = vmatprep.subr.mxu0 0.0
        %429 = vmatpush1.msra.mxu0 %v340
        %430 = vmatprep.subr.mxu0 0.0
        %431 = vmatpush1.msra.mxu0 %v339
        %432 = vmatprep.subr.mxu0 0.0
        %433 = vmatpush2.msra.mxu0 %v370
        %434 = vmatprep.subr.mxu0 0.0
        %435 = vmatpush2.msra.mxu0 %v369
        %436 = vmatprep.subr.mxu0 0.0
        %437 = vmatpush2.msra.mxu0 %v368
        %438 = vmatprep.subr.mxu0 0.0
        %439 = vmatpush2.msra.mxu0 %v367
        %440 = vmatprep.subr.mxu0 0.0
        %441 = vmatpush2.msra.mxu0 %v366
        %442 = vmatprep.subr.mxu0 0.0
        %443 = vmatpush2.msra.mxu0 %v365
        %444 = vmatprep.subr.mxu0 0.0
        %445 = vmatpush2.msra.mxu0 %v364
        %446 = vmatprep.subr.mxu0 0.0
        %447 = vmatpush2.msra.mxu0 %v363
        %448 = vmatprep.subr.mxu0 0.0
        %449 = vmatpush2.msra.mxu0 %v362
        %450 = vmatprep.subr.mxu0 0.0
        %451 = vmatpush2.msra.mxu0 %v361
        %452 = vmatprep.subr.mxu0 0.0
        %453 = vmatpush2.msra.mxu0 %v360
        %454 = vmatprep.subr.mxu0 0.0
        %455 = vmatpush2.msra.mxu0 %v359
        %456 = vmatprep.subr.mxu0 0.0
        %457 = vmatpush2.msra.mxu0 %v358
        %458 = vmatprep.subr.mxu0 0.0
        %459 = vmatpush2.msra.mxu0 %v357
        %460 = vmatprep.subr.mxu0 0.0
        %461 = vmatpush2.msra.mxu0 %v356
        %462 = vmatprep.subr.mxu0 0.0
        %463 = vmatpush2.msra.mxu0 %v355
        %464 = vmatprep.mubr.f32.mxu0 %v185
        %465 = vmatmul.mubr.f32.gmra.mxu0 %v184
        %v466 = vpop.f32.mrf.mxu0
        %v467 = vadd.f32 0.0, %v466
        %v468 = vpop.f32.mrf.mxu0
        %469 = vmatprep.mubr.f32.mxu0 %v188
        %470 = vmatmul.mubr.f32.gmra.mxu0 %v187
        %v471 = vpop.f32.mrf.mxu0
        %v472 = vadd.f32 0.0, %v471
        %v473 = vpop.f32.mrf.mxu0
        %474 = vmatprep.mubr.f32.mxu0 %v191
        %475 = vmatmul.mubr.f32.gmra.mxu0 %v190
        %v476 = vpop.f32.mrf.mxu0
        %v477 = vadd.f32 0.0, %v476
        %v478 = vpop.f32.mrf.mxu0
        %479 = vmatprep.mubr.f32.mxu0 %v194
        %480 = vmatmul.mubr.f32.gmra.mxu0 %v193
        %v481 = vpop.f32.mrf.mxu0
        %v482 = vadd.f32 0.0, %v481
        %v483 = vpop.f32.mrf.mxu0
        %484 = vmatprep.mubr.f32.mxu0 %v197
        %485 = vmatmul.mubr.f32.gmra.mxu0 %v196
        %v486 = vpop.f32.mrf.mxu0
        %v487 = vadd.f32 0.0, %v486
        %v488 = vpop.f32.mrf.mxu0
        %489 = vdwg.mxu0
        %490 = vmatprep.subr.mxu0 0.0
        %491 = vmatpush1.msra.mxu0 0.0
        %492 = vmatprep.subr.mxu0 0.0
        %493 = vmatpush1.msra.mxu0 0.0
        %494 = vmatprep.subr.mxu0 0.0
        %495 = vmatpush1.msra.mxu0 0.0
        %496 = vmatprep.subr.mxu0 0.0
        %497 = vmatpush1.msra.mxu0 0.0
        %498 = vmatprep.subr.mxu0 0.0
        %499 = vmatpush1.msra.mxu0 0.0
        %500 = vmatprep.subr.mxu0 0.0
        %501 = vmatpush1.msra.mxu0 0.0
        %502 = vmatprep.subr.mxu0 0.0
        %503 = vmatpush1.msra.mxu0 0.0
        %504 = vmatprep.subr.mxu0 0.0
        %505 = vmatpush1.msra.mxu0 %v398
        %506 = vmatprep.subr.mxu0 0.0
        %507 = vmatpush1.msra.mxu0 %v378
        %508 = vmatprep.subr.mxu0 0.0
        %509 = vmatpush1.msra.mxu0 %v377
        %510 = vmatprep.subr.mxu0 0.0
        %511 = vmatpush1.msra.mxu0 %v376
        %512 = vmatprep.subr.mxu0 0.0
        %513 = vmatpush1.msra.mxu0 %v375
        %514 = vmatprep.subr.mxu0 0.0
        %515 = vmatpush1.msra.mxu0 %v374
        %516 = vmatprep.subr.mxu0 0.0
        %517 = vmatpush1.msra.mxu0 %v373
        %518 = vmatprep.subr.mxu0 0.0
        %519 = vmatpush1.msra.mxu0 %v372
        %520 = vmatprep.subr.mxu0 0.0
        %521 = vmatpush1.msra.mxu0 %v371
        %522 = vmatprep.subr.mxu0 0.0
        %523 = vmatpush2.msra.mxu0 0.0
        %524 = vmatprep.subr.mxu0 0.0
        %525 = vmatpush2.msra.mxu0 0.0
        %526 = vmatprep.subr.mxu0 0.0
        %527 = vmatpush2.msra.mxu0 0.0
        %528 = vmatprep.subr.mxu0 0.0
        %529 = vmatpush2.msra.mxu0 0.0
        %530 = vmatprep.subr.mxu0 0.0
        %531 = vmatpush2.msra.mxu0 0.0
        %532 = vmatprep.subr.mxu0 0.0
        %533 = vmatpush2.msra.mxu0 0.0
        %534 = vmatprep.subr.mxu0 0.0
        %535 = vmatpush2.msra.mxu0 0.0
        %536 = vmatprep.subr.mxu0 0.0
        %537 = vmatpush2.msra.mxu0 0.0
        %538 = vmatprep.subr.mxu0 0.0
        %539 = vmatpush2.msra.mxu0 0.0
        %540 = vmatprep.subr.mxu0 0.0
        %541 = vmatpush2.msra.mxu0 0.0
        %542 = vmatprep.subr.mxu0 0.0
        %543 = vmatpush2.msra.mxu0 0.0
        %544 = vmatprep.subr.mxu0 0.0
        %545 = vmatpush2.msra.mxu0 0.0
        %546 = vmatprep.subr.mxu0 0.0
        %547 = vmatpush2.msra.mxu0 0.0
        %548 = vmatprep.subr.mxu0 0.0
        %549 = vmatpush2.msra.mxu0 0.0
        %550 = vmatprep.subr.mxu0 0.0
        %551 = vmatpush2.msra.mxu0 0.0
        %552 = vmatprep.subr.mxu0 0.0
        %553 = vmatpush2.msra.mxu0 0.0
        %554 = vmatprep.mubr.f32.mxu0 0.0
        %555 = vmatmul.mubr.f32.gmra.mxu0 %v382
        %v556 = vpop.f32.mrf.mxu0
        %v557 = vadd.f32 %v467, %v556
        %v558 = vpop.f32.mrf.mxu0
        %559 = vmatprep.mubr.f32.mxu0 0.0
        %560 = vmatmul.mubr.f32.gmra.mxu0 %v385
        %v561 = vpop.f32.mrf.mxu0
        %v562 = vadd.f32 %v472, %v561
        %v563 = vpop.f32.mrf.mxu0
        %564 = vmatprep.mubr.f32.mxu0 0.0
        %565 = vmatmul.mubr.f32.gmra.mxu0 %v388
        %v566 = vpop.f32.mrf.mxu0
        %v567 = vadd.f32 %v477, %v566
        %v568 = vpop.f32.mrf.mxu0
        %569 = vmatprep.mubr.f32.mxu0 0.0
        %570 = vmatmul.mubr.f32.gmra.mxu0 %v391
        %v571 = vpop.f32.mrf.mxu0
        %v572 = vadd.f32 %v482, %v571
        %v573 = vpop.f32.mrf.mxu0
        %574 = vmatprep.mubr.f32.mxu0 0.0
        %575 = vmatmul.mubr.f32.gmra.mxu0 %v394
        %v576 = vpop.f32.mrf.mxu0
        %v577 = vadd.f32 %v487, %v576
        %v578 = vpop.f32.mrf.mxu0
        %579 = vdwg.mxu0
        %v580 = vcvt.s32.f32 %v202
        %v581 = vadd.s32 %v202, 4294967295
        %vm582 = vcmp.ge.s32.totalorder %v581, 0
        %vm583 = vcmp.lt.s32.totalorder %v581, 16
        %vm584 = vmand %vm582, %vm583
        %v585 = vsel %vm582, 1, 0
        %v586 = vrot.slane %v585, 1
        %vm587 = vcmp.ne.s32.totalorder %v586, 0
        %vm588 = vmand %vm584, %vm587
        %v589 = vsel %vm583, 1, 0
        %v590 = vrot.slane %v589, 1
        %vm591 = vcmp.ne.s32.totalorder %v590, 0
        %vm592 = vmand %vm588, %vm591
        %v593 = vadd.f32 %v580, -1.0
        %v594 = vsub.f32 %v593, %v201
        %v595 = vmul.f32 %v594, %v594
        %v597 = vrot.slane %v595, 1
        %v599 = vadd.f32 %v595, %v597
        %vm600 = vcmp.ne.f32.partialorder %v557, 0.0
        %v601 = vsel %vm592, 1, 0
        %v602 = vlaneseq
        %v603 = vshrl.u32 %v602, 7
        %v604 = vsub.s32 0, %v603
        %v605 = vrot.slane %v601, %v604
        %vm606 = vcmp.eq.s32.totalorder %v605, 1
        %vm607 = vmand %vm606, %vm600
        %v608 = vlaneseq
        %v609 = vshrl.u32 %v608, 7
        %v610 = vsub.s32 0, %v609
        %v611 = vrot.slane %v599, %v610
        %vm612 = vcmp.lt.f32.partialorder %v611, 1e+30
        %vm613 = vmand %vm607, %vm612
        %v614 = vsel %vm613, %v557, 0.0
        %v615 = vsel %vm613, %v611, 1e+30
        %vm616 = vcmp.ge.s32.totalorder %v202, 0
        %vm617 = vcmp.lt.s32.totalorder %v202, 16
        %vm618 = vmand %vm616, %vm617
        %vm619 = vmand %vm618, %vm587
        %vm620 = vmand %vm619, %vm591
        %v621 = vadd.f32 %v580, 0.0
        %v622 = vsub.f32 %v621, %v201
        %v623 = vmul.f32 %v622, %v622
        %v624 = vadd.f32 %v623, %v597
        %v625 = vsel %vm620, 1, 0
        %v626 = vlaneseq
        %v627 = vshrl.u32 %v626, 7
        %v628 = vsub.s32 0, %v627
        %v629 = vrot.slane %v625, %v628
        %vm630 = vcmp.eq.s32.totalorder %v629, 1
        %vm631 = vmand %vm630, %vm600
        %v632 = vlaneseq
        %v633 = vshrl.u32 %v632, 7
        %v634 = vsub.s32 0, %v633
        %v635 = vrot.slane %v624, %v634
        %vm636 = vcmp.lt.f32.partialorder %v635, %v615
        %v637 = vsel %vm636, 1, 0
        %v638 = vrot.slane %v637, 4
        %vm639 = vcmp.ne.s32.totalorder %v638, 0
        %vm640 = vmand %vm631, %vm639
        %v642 = vrot.slane %v614, 4
        %v644 = vsel %vm640, %v557, %v642
        %v646 = vrot.slane %v615, 4
        %v648 = vsel %vm640, %v635, %v646
        %vm649 = vcmp.ge.s32.totalorder %v203, 0
        %vm650 = vcmp.lt.s32.totalorder %v203, 16
        %vm651 = vmand %vm649, %vm650
        %vm652 = vmand %vm651, %vm587
        %vm653 = vmand %vm652, %vm591
        %v654 = vadd.f32 %v580, 1.0
        %v655 = vsub.f32 %v654, %v201
        %v656 = vmul.f32 %v655, %v655
        %v657 = vadd.f32 %v656, %v597
        %vm658 = vcmp.ne.f32.partialorder %v562, 0.0
        %v659 = vsel %vm653, 1, 0
        %v660 = vlaneseq
        %v661 = vshrl.u32 %v660, 7
        %v662 = vsub.s32 0, %v661
        %v663 = vrot.slane %v659, %v662
        %vm664 = vcmp.eq.s32.totalorder %v663, 1
        %vm665 = vmand %vm664, %vm658
        %v666 = vlaneseq
        %v667 = vshrl.u32 %v666, 7
        %v668 = vsub.s32 0, %v667
        %v669 = vrot.slane %v657, %v668
        %vm670 = vcmp.lt.f32.partialorder %v669, %v648
        %v671 = vsel %vm670, 1, 0
        %v672 = vrot.slane %v671, 4
        %vm673 = vcmp.ne.s32.totalorder %v672, 0
        %vm674 = vmand %vm665, %vm673
        %v676 = vrot.slane %v644, 4
        %v678 = vsel %vm674, %v562, %v676
        %v680 = vrot.slane %v648, 4
        %v682 = vsel %vm674, %v669, %v680
        %v683 = vsel %vm616, 1, 0
        %v684 = vrot.slane %v683, 1
        %vm685 = vcmp.ne.s32.totalorder %v684, 0
        %vm686 = vmand %vm584, %vm685
        %v687 = vsel %vm617, 1, 0
        %v688 = vrot.slane %v687, 1
        %vm689 = vcmp.ne.s32.totalorder %v688, 0
        %vm690 = vmand %vm686, %vm689
        %v692 = vrot.slane %v623, 1
        %v694 = vadd.f32 %v595, %v692
        %v695 = vsel %vm690, 1, 0
        %v696 = vlaneseq
        %v697 = vshrl.u32 %v696, 7
        %v698 = vsub.s32 0, %v697
        %v699 = vrot.slane %v695, %v698
        %vm700 = vcmp.eq.s32.totalorder %v699, 1
        %vm701 = vmand %vm700, %vm658
        %v702 = vlaneseq
        %v703 = vshrl.u32 %v702, 7
        %v704 = vsub.s32 0, %v703
        %v705 = vrot.slane %v694, %v704
        %vm706 = vcmp.lt.f32.partialorder %v705, %v682
        %v707 = vsel %vm706, 1, 0
        %v708 = vrot.slane %v707, 4
        %vm709 = vcmp.ne.s32.totalorder %v708, 0
        %vm710 = vmand %vm701, %vm709
        %v712 = vrot.slane %v678, 4
        %v714 = vsel %vm710, %v562, %v712
        %v716 = vrot.slane %v682, 4
        %v718 = vsel %vm710, %v705, %v716
        %vm719 = vmand %vm618, %vm685
        %vm720 = vmand %vm719, %vm689
        %v721 = vadd.f32 %v623, %v692
        %vm722 = vcmp.ne.f32.partialorder %v567, 0.0
        %v723 = vsel %vm720, 1, 0
        %v724 = vlaneseq
        %v725 = vshrl.u32 %v724, 7
        %v726 = vsub.s32 0, %v725
        %v727 = vrot.slane %v723, %v726
        %vm728 = vcmp.eq.s32.totalorder %v727, 1
        %vm729 = vmand %vm728, %vm722
        %v730 = vlaneseq
        %v731 = vshrl.u32 %v730, 7
        %v732 = vsub.s32 0, %v731
        %v733 = vrot.slane %v721, %v732
        %vm734 = vcmp.lt.f32.partialorder %v733, %v718
        %v735 = vsel %vm734, 1, 0
        %v736 = vrot.slane %v735, 4
        %vm737 = vcmp.ne.s32.totalorder %v736, 0
        %vm738 = vmand %vm729, %vm737
        %v740 = vrot.slane %v714, 4
        %v742 = vsel %vm738, %v567, %v740
        %v744 = vrot.slane %v718, 4
        %v746 = vsel %vm738, %v733, %v744
        %vm747 = vmand %vm651, %vm685
        %vm748 = vmand %vm747, %vm689
        %v749 = vadd.f32 %v656, %v692
        %v750 = vsel %vm748, 1, 0
        %v751 = vlaneseq
        %v752 = vshrl.u32 %v751, 7
        %v753 = vsub.s32 0, %v752
        %v754 = vrot.slane %v750, %v753
        %vm755 = vcmp.eq.s32.totalorder %v754, 1
        %vm756 = vmand %vm755, %vm722
        %v757 = vlaneseq
        %v758 = vshrl.u32 %v757, 7
        %v759 = vsub.s32 0, %v758
        %v760 = vrot.slane %v749, %v759
        %vm761 = vcmp.lt.f32.partialorder %v760, %v746
        %v762 = vsel %vm761, 1, 0
        %v763 = vrot.slane %v762, 4
        %vm764 = vcmp.ne.s32.totalorder %v763, 0
        %vm765 = vmand %vm756, %vm764
        %v767 = vrot.slane %v742, 4
        %v769 = vsel %vm765, %v567, %v767
        %v771 = vrot.slane %v746, 4
        %v773 = vsel %vm765, %v760, %v771
        %v774 = vsel %vm649, 1, 0
        %v775 = vrot.slane %v774, 1
        %vm776 = vcmp.ne.s32.totalorder %v775, 0
        %vm777 = vmand %vm584, %vm776
        %v778 = vsel %vm650, 1, 0
        %v779 = vrot.slane %v778, 1
        %vm780 = vcmp.ne.s32.totalorder %v779, 0
        %vm781 = vmand %vm777, %vm780
        %v783 = vrot.slane %v656, 1
        %v785 = vadd.f32 %v595, %v783
        %vm786 = vcmp.ne.f32.partialorder %v572, 0.0
        %v787 = vsel %vm781, 1, 0
        %v788 = vlaneseq
        %v789 = vshrl.u32 %v788, 7
        %v790 = vsub.s32 0, %v789
        %v791 = vrot.slane %v787, %v790
        %vm792 = vcmp.eq.s32.totalorder %v791, 1
        %vm793 = vmand %vm792, %vm786
        %v794 = vlaneseq
        %v795 = vshrl.u32 %v794, 7
        %v796 = vsub.s32 0, %v795
        %v797 = vrot.slane %v785, %v796
        %vm798 = vcmp.lt.f32.partialorder %v797, %v773
        %v799 = vsel %vm798, 1, 0
        %v800 = vrot.slane %v799, 4
        %vm801 = vcmp.ne.s32.totalorder %v800, 0
        %vm802 = vmand %vm793, %vm801
        %v804 = vrot.slane %v769, 4
        %v806 = vsel %vm802, %v572, %v804
        %v808 = vrot.slane %v773, 4
        %v810 = vsel %vm802, %v797, %v808
        %vm811 = vmand %vm618, %vm776
        %vm812 = vmand %vm811, %vm780
        %v813 = vadd.f32 %v623, %v783
        %v814 = vsel %vm812, 1, 0
        %v815 = vlaneseq
        %v816 = vshrl.u32 %v815, 7
        %v817 = vsub.s32 0, %v816
        %v818 = vrot.slane %v814, %v817
        %vm819 = vcmp.eq.s32.totalorder %v818, 1
        %vm820 = vmand %vm819, %vm786
        %v821 = vlaneseq
        %v822 = vshrl.u32 %v821, 7
        %v823 = vsub.s32 0, %v822
        %v824 = vrot.slane %v813, %v823
        %vm825 = vcmp.lt.f32.partialorder %v824, %v810
        %v826 = vsel %vm825, 1, 0
        %v827 = vrot.slane %v826, 4
        %vm828 = vcmp.ne.s32.totalorder %v827, 0
        %vm829 = vmand %vm820, %vm828
        %v831 = vrot.slane %v806, 4
        %v833 = vsel %vm829, %v572, %v831
        %v835 = vrot.slane %v810, 4
        %v837 = vsel %vm829, %v824, %v835
        %vm838 = vmand %vm651, %vm776
        %vm839 = vmand %vm838, %vm780
        %v840 = vadd.f32 %v656, %v783
        %vm841 = vcmp.ne.f32.partialorder %v577, 0.0
        %v842 = vsel %vm839, 1, 0
        %v843 = vlaneseq
        %v844 = vshrl.u32 %v843, 7
        %v845 = vsub.s32 0, %v844
        %v846 = vrot.slane %v842, %v845
        %vm847 = vcmp.eq.s32.totalorder %v846, 1
        %vm848 = vmand %vm847, %vm841
        %v849 = vlaneseq
        %v850 = vshrl.u32 %v849, 7
        %v851 = vsub.s32 0, %v850
        %v852 = vrot.slane %v840, %v851
        %vm853 = vcmp.lt.f32.partialorder %v852, %v837
        %v854 = vsel %vm853, 1, 0
        %v855 = vrot.slane %v854, 4
        %vm856 = vcmp.ne.s32.totalorder %v855, 0
        %vm857 = vmand %vm848, %vm856
        %v859 = vrot.slane %v833, 4
        %v861 = vsel %vm857, %v577, %v859
        %862 = vst [vmem:[%s171] sm:$0xf] %v861
        %s863 = sand.u32 %s92, 1
        %s864 = scalar_lea.sflag [#allocation3], %s863
        %s865 = sand.u32 %s92, 1
        %s866 = smul.addr %s865, 4
        %s867 = scalar_lea.vmem [#allocation2], %s866
        // Predicated region
        $region29: #{tpu_custom_call.1} parent=27 // pred_check
          %p868 = pneg %p102
        $region30: #{tpu_custom_call.1} parent=27 // pred_check_branch
          %870 = sbr.rel (%p868) target = $region32
        $region31: #{tpu_custom_call.1} parent=27 // pred_region
          %s872 = ssub.s32 64, 64
          %873 = vsyncadd %s864, %s872
          %s874 = sadd.s32 %s21, %s20
          %s875 = smul.addr %s874, 64
          %s876 = scalar_lea.hbm %s2, %s875
          %s878 = sshll.u32 %s867, 4
          %s879 = int_to_ptr.vmem [resolvable:$true] %s878
          %881 = dma.vmem_to_hbm [thread:$0]  %s879, 64, %s876, %s864
        $region32: #{tpu_custom_call.1} parent=27 // pred_fallthru
          _
      $region28: #{tpu_custom_call.1} parent=5 // pred_fallthru
        _
      %p882 = scmp.le.s32.totalorder 2, %s11
      // Predicated region
      $region33: #{tpu_custom_call.1} parent=5 // pred_check
        %p883 = pneg %p882
      $region34: #{tpu_custom_call.1} parent=5 // pred_check_branch
        %885 = sbr.rel (%p883) target = $region36
      $region35: #{tpu_custom_call.1} parent=5 // pred_region
        %s886 = ssub.s32 %s11, 2
        // Predicated region
        $region37: #{tpu_custom_call.1} parent=35 // pred_check
          %p887 = pneg %p108
        $region38: #{tpu_custom_call.1} parent=35 // pred_check_branch
          %889 = sbr.rel (%p887) target = $region40
        $region39: #{tpu_custom_call.1} parent=35 // pred_region
          %s890 = sand.u32 %s93, 1
          %s891 = scalar_lea.sflag [#allocation3], %s890
          %s892 = sand.u32 %s93, 1
          %s893 = smul.addr %s892, 4
          %s894 = scalar_lea.vmem [#allocation2], %s893
          %895 = dma.done %s891, 64
        $region40: #{tpu_custom_call.1} parent=35 // pred_fallthru
          _
      $region36: #{tpu_custom_call.1} parent=5 // pred_fallthru
        _
    $region6: #{tpu_custom_call.1} parent=1 // loop_footer
      %s15 = sadd.s32 1, %s11
    $region7: #{tpu_custom_call.1} parent=1 // loop_footer_branch
      %10 = sbr.rel target = $region3
    $region8: #{tpu_custom_call.1} parent=1 // loop_exit
      _
    %896 = vsyncpa [#allocation3], 1
    %s897 = scalar_lea.sflag [#allocation3], 1
    %898 = vsyncpa %s897, 1

</llo_original>
